<compile_context>
chip_gen: v7x
topology: tpu7x:2x2x1
jax: 0.10.0
libtpu: 0.0.40
codegen_flags: <defaults>
</compile_context>

<pallas_src>
import functools

import jax
import jax.numpy as jnp
from jax.experimental import pallas as pl
from jax.experimental.pallas import tpu as pltpu


def _round_up(n, m):
    return m * pl.cdiv(n, m)


def winenet_kernel(x_ref, p_ref, o_ref, xs_ref, *, feat):
    """Fused fc1 -> ReLU -> fc2 on one batch block.

    x_ref : (NB, F)   unpadded input rows for this block.
    p_ref : (FP + 8 + LP + 8, LP) packed parameter slab:
              rows [0, FP)          : W1 (zero padded)
              row  FP               : b1 (8-row aligned block)
              rows [FP+8, FP+8+LP)  : W2 (zero padded)
              row  FP+8+LP          : b2 (8-row aligned block)
    o_ref : (NB, C)   only the real logits are written back (narrow store).
    xs_ref: (NR, FP)  VMEM scratch; x zero-padded to the 8-aligned feature
                      width so both matmuls stay MXU-shaped (NR >= NB).
    """
    fp = xs_ref.shape[1]
    lp = p_ref.shape[1]
    nb = x_ref.shape[0]
    nc = o_ref.shape[1]

    w1 = p_ref[:fp, :]                                      # (FP, LP)
    b1 = p_ref[fp:fp + 1, :].astype(jnp.float32)            # (1, LP)
    w2 = p_ref[fp + 8:fp + 8 + lp, :]                       # (LP, LP)
    b2 = p_ref[fp + 8 + lp:fp + 9 + lp, :].astype(jnp.float32)

    # Zero-pad the feature dim (F -> FP) into VMEM scratch.  Re-zeroed every
    # step so the kernel stays correct under megacore grid splitting.
    xs_ref[...] = jnp.zeros_like(xs_ref)
    xs_ref[:nb, :feat] = x_ref[...]

    h = jnp.dot(xs_ref[...], w1, preferred_element_type=jnp.float32) + b1
    h = jnp.maximum(h, 0.0)                                  # ReLU in f32
    y = jnp.dot(h.astype(w2.dtype), w2, preferred_element_type=jnp.float32) + b2

    # Narrow store: only the C real logit lanes go back to HBM.
    o_ref[...] = y[:o_ref.shape[0], :nc].astype(o_ref.dtype)


def pack_params(w1, b1, w2, b2, dtype=jnp.float32):
    """Pack all parameters into one lane-dense, 8-row-aligned slab.

    Call ONCE (outside the per-step jitted forward) and reuse the slab.
    Returns (slab, (F, C)).
    """
    f, h = w1.shape
    c = w2.shape[1]
    fp = _round_up(f, 8)
    lp = _round_up(max(h, c), 128)
    w1p = jnp.zeros((fp, lp), dtype).at[:f, :h].set(w1.astype(dtype))
    b1p = jnp.zeros((8, lp), dtype).at[0, :h].set(jnp.reshape(b1, (-1,)).astype(dtype))
    w2p = jnp.zeros((lp, lp), dtype).at[:h, :c].set(w2.astype(dtype))
    b2p = jnp.zeros((8, lp), dtype).at[0, :c].set(jnp.reshape(b2, (-1,)).astype(dtype))
    slab = jnp.concatenate([w1p, b1p, w2p, b2p], axis=0)     # (FP + 16 + LP, LP)
    return slab, (f, c)


def winenet_forward(x, slab, num_classes, *, batch_tile_cap=2048,
                    small_batch_threshold=128):
    """y = relu(x @ W1 + b1) @ W2 + b2, fused in one Pallas kernel.

    `slab` is the pre-packed parameter slab from pack_params(); its dtype
    (f32 or bf16) sets the MXU input precision.  Accumulation is always f32.
    """
    B, F = x.shape
    LP = slab.shape[1]
    R = slab.shape[0]
    FP = R - 16 - LP
    assert FP >= F, "packed slab does not match the input feature width"
    C = num_classes
    dtype = slab.dtype
    x = x.astype(dtype)

    # Sublane multiple: 8 for f32, 16 for packed bf16 operands.
    multiple = 16 if dtype == jnp.bfloat16 else 8
    kernel = functools.partial(winenet_kernel, feat=F)

    if B <= small_batch_threshold:
        # Tiny problem: gridless call, whole arrays resident in VMEM (no
        # pipeline prologue/epilogue).
        rows = _round_up(B, multiple)
        return pl.pallas_call(
            kernel,
            out_shape=jax.ShapeDtypeStruct((B, C), dtype),
            in_specs=[
                pl.BlockSpec(memory_space=pltpu.MemorySpace.VMEM),
                pl.BlockSpec(memory_space=pltpu.MemorySpace.VMEM),
            ],
            out_specs=pl.BlockSpec(memory_space=pltpu.MemorySpace.VMEM),
            scratch_shapes=[pltpu.VMEM((rows, FP), dtype)],
        )(x, slab)

    # Large batch: tile over B only.  tile ~= ceil(B/2) (rounded up, capped)
    # => big tiles to amortize per-step overhead AND >=2 grid steps so v7x's
    # two TensorCores both get work ("parallel" axis).  Weights stay
    # VMEM-resident via the constant index_map.  Pallas masks the partial
    # last block, so no batch padding is needed.
    tile = max(multiple, min(batch_tile_cap, _round_up(pl.cdiv(B, 2), multiple)))
    assert tile % multiple == 0
    grid = (pl.cdiv(B, tile),)

    return pl.pallas_call(
        kernel,
        out_shape=jax.ShapeDtypeStruct((B, C), dtype),
        grid=grid,
        in_specs=[
            pl.BlockSpec((tile, F), lambda i: (i, 0)),
            pl.BlockSpec((R, LP), lambda i: (0, 0)),
        ],
        out_specs=pl.BlockSpec((tile, C), lambda i: (i, 0)),
        scratch_shapes=[pltpu.VMEM((tile, FP), dtype)],
        compiler_params=pltpu.CompilerParams(
            dimension_semantics=("parallel",)),
    )(x, slab)


def init_params(key, input_size, hidden_size, output_size=3, dtype=jnp.float32):
    """Deterministic init mimicking nn.Linear's uniform(-1/sqrt(fan_in), +1/sqrt(fan_in))."""
    k1, k2, k3, k4 = jax.random.split(key, 4)
    lim1 = 1.0 / jnp.sqrt(jnp.float32(input_size))
    lim2 = 1.0 / jnp.sqrt(jnp.float32(hidden_size))
    w1 = jax.random.uniform(k1, (input_size, hidden_size), dtype, -lim1, lim1)
    b1 = jax.random.uniform(k2, (1, hidden_size), dtype, -lim1, lim1)
    w2 = jax.random.uniform(k3, (hidden_size, output_size), dtype, -lim2, lim2)
    b2 = jax.random.uniform(k4, (1, output_size), dtype, -lim2, lim2)
    return w1, b1, w2, b2


if __name__ == "__main__":
    # Wine dataset dims: 13 features, 3 classes; hidden=32, batch=8.
    B, F, H, C = 8, 13, 32, 3
    key = jax.random.PRNGKey(0)
    kx, kp, kx2 = jax.random.split(key, 3)
    x = jax.random.normal(kx, (B, F), dtype=jnp.float32)
    w1, b1, w2, b2 = init_params(kp, F, H, C)

    # Pack parameters ONCE, outside the jitted forward, and reuse.
    slab_f32, _ = pack_params(w1, b1, w2, b2, jnp.float32)
    fwd = jax.jit(functools.partial(winenet_forward, num_classes=C))

    # Small-batch (gridless) f32 path.
    out = jax.block_until_ready(fwd(x, slab_f32))
    ref = jnp.maximum(x @ w1 + b1, 0.0) @ w2 + b2
    assert out.shape == (B, C)
    assert jnp.allclose(out, ref, atol=1e-5, rtol=1e-5)

    # Large-batch (batch-tiled, "parallel", >=2 grid steps) f32 path.
    B2 = 4096
    x2 = jax.random.normal(kx2, (B2, F), dtype=jnp.float32)
    out2 = jax.block_until_ready(fwd(x2, slab_f32))
    ref2 = jnp.maximum(x2 @ w1 + b1, 0.0) @ w2 + b2
    assert out2.shape == (B2, C)
    assert jnp.allclose(out2, ref2, atol=1e-5, rtol=1e-5)

    # bf16 I/O path: halves input HBM bytes and feeds the bf16 MXU on
    # v6e/v7x; accumulation stays f32, so only a loosened tolerance is needed.
    slab_bf16, _ = pack_params(w1, b1, w2, b2, jnp.bfloat16)
    out3 = jax.block_until_ready(fwd(x2.astype(jnp.bfloat16), slab_bf16))
    assert out3.shape == (B2, C)
    assert jnp.allclose(out3.astype(jnp.float32), ref2, atol=1e-1, rtol=1e-1)

    print("KERNEL_OK")
</pallas_src>

<mosaic_0001>
module attributes {stable_mosaic.version = 11 : i64} {
  func.func @winenet_kernel(%arg0: memref<8x13xf32, #tpu.memory_space<vmem>>, %arg1: memref<160x128xf32, #tpu.memory_space<vmem>>, %arg2: memref<8x3xf32, #tpu.memory_space<vmem>>, %arg3: memref<8x16xf32, #tpu.memory_space<vmem>>) attributes {dimension_semantics = [], scalar_prefetch = 0 : i64, scratch_operands = 1 : i64, tpu.core_type = #tpu.core_type<tc>} {
    %c0 = arith.constant 0 : index
    %c0_0 = arith.constant 0 : index
    %0 = vector.load %arg1[%c0, %c0_0] : memref<160x128xf32, #tpu.memory_space<vmem>>, vector<16x128xf32>
    %c16 = arith.constant 16 : index
    %c0_1 = arith.constant 0 : index
    %1 = vector.load %arg1[%c16, %c0_1] : memref<160x128xf32, #tpu.memory_space<vmem>>, vector<1x128xf32>
    %c24 = arith.constant 24 : index
    %c0_2 = arith.constant 0 : index
    %2 = vector.load %arg1[%c24, %c0_2] : memref<160x128xf32, #tpu.memory_space<vmem>>, vector<128x128xf32>
    %c152 = arith.constant 152 : index
    %c0_3 = arith.constant 0 : index
    %3 = vector.load %arg1[%c152, %c0_3] : memref<160x128xf32, #tpu.memory_space<vmem>>, vector<1x128xf32>
    %cst = arith.constant 0.000000e+00 : f32
    %4 = vector.broadcast %cst : f32 to vector<8x16xf32>
    %c0_4 = arith.constant 0 : index
    %c0_5 = arith.constant 0 : index
    %5 = vector.load %arg3[%c0_4, %c0_5] : memref<8x16xf32, #tpu.memory_space<vmem>>, vector<8x16xf32>
    tpu.vector_store %arg3[%c0_4, %c0_5], %4 {strides = array<i32>} : memref<8x16xf32, #tpu.memory_space<vmem>>, vector<8x16xf32>,
    %c0_6 = arith.constant 0 : index
    %c0_7 = arith.constant 0 : index
    %6 = vector.load %arg0[%c0_6, %c0_7] : memref<8x13xf32, #tpu.memory_space<vmem>>, vector<8x13xf32>
    %c0_8 = arith.constant 0 : index
    %c0_9 = arith.constant 0 : index
    %7 = vector.load %arg3[%c0_8, %c0_9] : memref<8x16xf32, #tpu.memory_space<vmem>>, vector<8x13xf32>
    tpu.vector_store %arg3[%c0_8, %c0_9], %6 {strides = array<i32>} : memref<8x16xf32, #tpu.memory_space<vmem>>, vector<8x13xf32>,
    %c0_10 = arith.constant 0 : index
    %c0_11 = arith.constant 0 : index
    %8 = vector.load %arg3[%c0_10, %c0_11] : memref<8x16xf32, #tpu.memory_space<vmem>>, vector<8x16xf32>
    %cst_12 = arith.constant dense<0.000000e+00> : vector<8x128xf32>
    %9 = tpu.matmul %8, %0, %cst_12 {dimension_numbers = #tpu.dot_dimension_numbers<[1], [0], [0], [1], [0, 0, 1, 1], [], []>} : vector<8x16xf32>, vector<16x128xf32>, vector<8x128xf32> -> vector<8x128xf32>
    %10 = vector.broadcast %1 : vector<1x128xf32> to vector<8x128xf32>
    %11 = arith.addf %9, %10 : vector<8x128xf32>
    %cst_13 = arith.constant 0.000000e+00 : f32
    %12 = vector.broadcast %cst_13 : f32 to vector<8x128xf32>
    %13 = arith.maximumf %11, %12 : vector<8x128xf32>
    %cst_14 = arith.constant dense<0.000000e+00> : vector<8x128xf32>
    %14 = tpu.matmul %13, %2, %cst_14 {dimension_numbers = #tpu.dot_dimension_numbers<[1], [0], [0], [1], [0, 0, 1, 1], [], []>} : vector<8x128xf32>, vector<128x128xf32>, vector<8x128xf32> -> vector<8x128xf32>
    %15 = vector.broadcast %3 : vector<1x128xf32> to vector<8x128xf32>
    %16 = arith.addf %14, %15 : vector<8x128xf32>
    %17 = vector.extract_strided_slice %16 {offsets = [0, 0], sizes = [8, 3], strides = [1, 1]} : vector<8x128xf32> to vector<8x3xf32>
    %c0_15 = arith.constant 0 : index
    %c0_16 = arith.constant 0 : index
    %18 = vector.load %arg2[%c0_15, %c0_16] : memref<8x3xf32, #tpu.memory_space<vmem>>, vector<8x3xf32>
    tpu.vector_store %arg2[%c0_15, %c0_16], %17 {strides = array<i32>} : memref<8x3xf32, #tpu.memory_space<vmem>>, vector<8x3xf32>,
    return
  }
}

</mosaic_0001>

<llo_original>
// kernel: winenet_forward.1
$region0: #{winenet_forward.1}
  #allocation0 [shape = 'u32[]', space=smem, size = 0x4, offset = 0x4, fixed_abs, tag = 'smem constant byte address 0x4 - core index']
  #allocation1 [shape = 'u32[144,128]{1,0:T(1,128)}', space=vmem, size = 0x12000, scoped, tag = 'internal scratch']
  #allocation2 [shape = 'f32[8,16]{1,0:T(8,128)}', space=vmem, size = 0x1000, scoped, tag = 'scratch operand']
  %s0 = inlined_call_operand.hbm [shape: f32[8,13], index: 0, kind: input, shape index: {}]
  %s1 = inlined_call_operand.hbm [shape: f32[160,128], index: 1, kind: input, shape index: {}]
  %s2 = inlined_call_operand.vmem [shape: f32[8,3], index: 2, kind: output, shape index: {}]
  %s3 = sld [smem:[#allocation0]]
  $region26: #{winenet_forward.1} parent=0
    _
  %s5 = ssub.s32 1, %s3
  %s6 = scalar_select 0, %s5, %s3
  $region1: #{winenet_forward.1} parent=0
    #allocation3 [shape = 'u8[4096]{0}', space=vmem, size = 0x1000, scoped, tag = 'input window, operand 0, single buffered']
    #allocation4 [shape = 's32[1]{0}', space=sflag, size = 0x4, scoped, tag = 'scoped memory for winenet_forward.1']
    #allocation5 [shape = 'u8[81920]{0}', space=vmem, size = 0x14000, scoped, tag = 'input window, operand 1, single buffered']
    #allocation6 [shape = 's32[1]{0}', space=sflag, size = 0x4, scoped, tag = 'scoped memory for winenet_forward.1']
    %7 = vsyncpa [#allocation4], 0
    %8 = vsyncpa [#allocation6], 0
    // Predicated region
    $region2: #{winenet_forward.1} parent=1 // pred_check
      _
    $region3: #{winenet_forward.1} parent=1 // pred_check_branch
      %10 = sbr.rel (0) target = $region5
    $region4: #{winenet_forward.1} parent=1 // pred_region
      %s12 = ssub.s32 128, 128
      %13 = vsyncadd [#allocation4], %s12
      %s15 = sshll.u32 [#allocation3], 4
      %s16 = int_to_ptr.vmem [resolvable:$true] %s15
      %18 = dma.hbm_to_vmem [thread:$0]  %s0, 128, %s16, [#allocation4]
    $region5: #{winenet_forward.1} parent=1 // pred_fallthru
      _
    // Predicated region
    $region6: #{winenet_forward.1} parent=1 // pred_check
      _
    $region7: #{winenet_forward.1} parent=1 // pred_check_branch
      %20 = sbr.rel (0) target = $region9
    $region8: #{winenet_forward.1} parent=1 // pred_region
      %s22 = ssub.s32 2560, 2560
      %23 = vsyncadd [#allocation6], %s22
      %s24 = sshll.u32 [#allocation5], 4
      %s25 = int_to_ptr.vmem [resolvable:$true] %s24
      %30 = dma.hbm_to_vmem [thread:$0]  %s1, 2560, %s25, [#allocation6], 128, 128, 8
    $region9: #{winenet_forward.1} parent=1 // pred_fallthru
      _
    // Predicated region
    $region10: #{winenet_forward.1} parent=1 // pred_check
      _
    $region11: #{winenet_forward.1} parent=1 // pred_check_branch
      %32 = sbr.rel (0) target = $region13
    $region12: #{winenet_forward.1} parent=1 // pred_region
      %33 = dma.done [#allocation4], 128
    $region13: #{winenet_forward.1} parent=1 // pred_fallthru
      _
    // Predicated region
    $region14: #{winenet_forward.1} parent=1 // pred_check
      _
    $region15: #{winenet_forward.1} parent=1 // pred_check_branch
      %35 = sbr.rel (0) target = $region17
    $region16: #{winenet_forward.1} parent=1 // pred_region
      %36 = dma.done [#allocation6], 2560
    $region17: #{winenet_forward.1} parent=1 // pred_fallthru
      _
    %v37 = vld [vmem:[#allocation5] sm:$0xff]
    %v38 = vld [vmem:[#allocation5 + $0x8] sm:$0xff]
    %v39 = vld [vmem:[#allocation5 + $0x10] sm:$0x1]
    %v40 = vld [vmem:[#allocation5 + $0x18] sm:$0xff]
    %v41 = vld [vmem:[#allocation5 + $0x20] sm:$0xff]
    %v42 = vld [vmem:[#allocation5 + $0x28] sm:$0xff]
    %v43 = vld [vmem:[#allocation5 + $0x30] sm:$0xff]
    %v44 = vld [vmem:[#allocation5 + $0x38] sm:$0xff]
    %v45 = vld [vmem:[#allocation5 + $0x40] sm:$0xff]
    %v46 = vld [vmem:[#allocation5 + $0x48] sm:$0xff]
    %v47 = vld [vmem:[#allocation5 + $0x50] sm:$0xff]
    %v48 = vld [vmem:[#allocation5 + $0x58] sm:$0xff]
    %v49 = vld [vmem:[#allocation5 + $0x60] sm:$0xff]
    %v50 = vld [vmem:[#allocation5 + $0x68] sm:$0xff]
    %v51 = vld [vmem:[#allocation5 + $0x70] sm:$0xff]
    %v52 = vld [vmem:[#allocation5 + $0x78] sm:$0xff]
    %v53 = vld [vmem:[#allocation5 + $0x80] sm:$0xff]
    %v54 = vld [vmem:[#allocation5 + $0x88] sm:$0xff]
    %v55 = vld [vmem:[#allocation5 + $0x90] sm:$0xff]
    %v56 = vld [vmem:[#allocation5 + $0x98] sm:$0x1]
    %vm57 = vcmask 130048
    %58 = vst.msk [vmem:[#allocation2] sm:$0xff] %vm57, 0.0
    %v59 = vld [vmem:[#allocation3] sm:$0xff]
    %vm60 = vcmask 105472
    %61 = vst.msk [vmem:[#allocation2] sm:$0xff] %vm60, %v59
    %v62 = vld [vmem:[#allocation2] sm:$0xff]
    %v63 = vlaneseq
    %v64 = vshrl.u32 %v63, 7
    %v65 = vsub.s32 0, %v64
    %v66 = vrot.slane %v39, %v65
    %v68 = vsel %vm57, %v62, 0
    %70 = vmatprep.subr.mxu0 0.0
    %71 = vmatpush1.msra.mxu0 %v37
    %72 = vmatprep.subr.mxu0 0.0
    %73 = vmatpush1.msra.mxu0 %v38
    %74 = vmatprep.subr.mxu0 0.0
    %75 = vmatpush1.msra.mxu0 0.0
    %76 = vmatprep.subr.mxu0 0.0
    %77 = vmatpush1.msra.mxu0 0.0
    %78 = vmatprep.subr.mxu0 0.0
    %79 = vmatpush1.msra.mxu0 0.0
    %80 = vmatprep.subr.mxu0 0.0
    %81 = vmatpush1.msra.mxu0 0.0
    %82 = vmatprep.subr.mxu0 0.0
    %83 = vmatpush1.msra.mxu0 0.0
    %84 = vmatprep.subr.mxu0 0.0
    %85 = vmatpush1.msra.mxu0 0.0
    %86 = vmatprep.subr.mxu0 0.0
    %87 = vmatpush1.msra.mxu0 0.0
    %88 = vmatprep.subr.mxu0 0.0
    %89 = vmatpush1.msra.mxu0 0.0
    %90 = vmatprep.subr.mxu0 0.0
    %91 = vmatpush1.msra.mxu0 0.0
    %92 = vmatprep.subr.mxu0 0.0
    %93 = vmatpush1.msra.mxu0 0.0
    %94 = vmatprep.subr.mxu0 0.0
    %95 = vmatpush1.msra.mxu0 0.0
    %96 = vmatprep.subr.mxu0 0.0
    %97 = vmatpush1.msra.mxu0 0.0
    %98 = vmatprep.subr.mxu0 0.0
    %99 = vmatpush1.msra.mxu0 0.0
    %100 = vmatprep.subr.mxu0 0.0
    %101 = vmatpush1.msra.mxu0 0.0
    %102 = vmatprep.subr.mxu0 0.0
    %103 = vmatpush1.msra.mxu0 0.0
    %104 = vmatprep.subr.mxu0 0.0
    %105 = vmatpush1.msra.mxu0 0.0
    %106 = vmatprep.subr.mxu0 0.0
    %107 = vmatpush1.msra.mxu0 0.0
    %108 = vmatprep.subr.mxu0 0.0
    %109 = vmatpush1.msra.mxu0 0.0
    %110 = vmatprep.subr.mxu0 0.0
    %111 = vmatpush1.msra.mxu0 0.0
    %112 = vmatprep.subr.mxu0 0.0
    %113 = vmatpush1.msra.mxu0 0.0
    %114 = vmatprep.subr.mxu0 0.0
    %115 = vmatpush1.msra.mxu0 0.0
    %116 = vmatprep.subr.mxu0 0.0
    %117 = vmatpush1.msra.mxu0 0.0
    %118 = vmatprep.subr.mxu0 0.0
    %119 = vmatpush1.msra.mxu0 0.0
    %120 = vmatprep.subr.mxu0 0.0
    %121 = vmatpush1.msra.mxu0 0.0
    %122 = vmatprep.subr.mxu0 0.0
    %123 = vmatpush1.msra.mxu0 0.0
    %124 = vmatprep.subr.mxu0 0.0
    %125 = vmatpush1.msra.mxu0 0.0
    %126 = vmatprep.subr.mxu0 0.0
    %127 = vmatpush1.msra.mxu0 0.0
    %128 = vmatprep.subr.mxu0 0.0
    %129 = vmatpush1.msra.mxu0 0.0
    %130 = vmatprep.subr.mxu0 0.0
    %131 = vmatpush1.msra.mxu0 0.0
    %132 = vmatprep.subr.mxu0 0.0
    %133 = vmatpush1.msra.mxu0 0.0
    %134 = vmatprep.mubr.f32.mxu0 0.0
    %135 = vmatmul.mubr.f32.gmra.mrb[0].mxu0 %v68
    %v136 = vpop.f32.mrb[0].mxu0
    %v137 = vadd.f32 %v66, %v136
    %v138 = vpop.f32.mrb[0].mxu0
    %139 = vdwg.mxu0
    %v140 = vmax.f32 %v137, 0.0
    %v141 = vlaneseq
    %v142 = vshrl.u32 %v141, 7
    %v143 = vsub.s32 0, %v142
    %v144 = vrot.slane %v56, %v143
    %145 = vmatprep.subr.mxu0 0.0
    %146 = vmatpush1.msra.mxu0 %v40
    %147 = vmatprep.subr.mxu0 0.0
    %148 = vmatpush1.msra.mxu0 %v41
    %149 = vmatprep.subr.mxu0 0.0
    %150 = vmatpush1.msra.mxu0 %v42
    %151 = vmatprep.subr.mxu0 0.0
    %152 = vmatpush1.msra.mxu0 %v43
    %153 = vmatprep.subr.mxu0 0.0
    %154 = vmatpush1.msra.mxu0 %v44
    %155 = vmatprep.subr.mxu0 0.0
    %156 = vmatpush1.msra.mxu0 %v45
    %157 = vmatprep.subr.mxu0 0.0
    %158 = vmatpush1.msra.mxu0 %v46
    %159 = vmatprep.subr.mxu0 0.0
    %160 = vmatpush1.msra.mxu0 %v47
    %161 = vmatprep.subr.mxu0 0.0
    %162 = vmatpush1.msra.mxu0 %v48
    %163 = vmatprep.subr.mxu0 0.0
    %164 = vmatpush1.msra.mxu0 %v49
    %165 = vmatprep.subr.mxu0 0.0
    %166 = vmatpush1.msra.mxu0 %v50
    %167 = vmatprep.subr.mxu0 0.0
    %168 = vmatpush1.msra.mxu0 %v51
    %169 = vmatprep.subr.mxu0 0.0
    %170 = vmatpush1.msra.mxu0 %v52
    %171 = vmatprep.subr.mxu0 0.0
    %172 = vmatpush1.msra.mxu0 %v53
    %173 = vmatprep.subr.mxu0 0.0
    %174 = vmatpush1.msra.mxu0 %v54
    %175 = vmatprep.subr.mxu0 0.0
    %176 = vmatpush1.msra.mxu0 %v55
    %177 = vmatprep.subr.mxu0 0.0
    %178 = vmatpush1.msra.mxu0 0.0
    %179 = vmatprep.subr.mxu0 0.0
    %180 = vmatpush1.msra.mxu0 0.0
    %181 = vmatprep.subr.mxu0 0.0
    %182 = vmatpush1.msra.mxu0 0.0
    %183 = vmatprep.subr.mxu0 0.0
    %184 = vmatpush1.msra.mxu0 0.0
    %185 = vmatprep.subr.mxu0 0.0
    %186 = vmatpush1.msra.mxu0 0.0
    %187 = vmatprep.subr.mxu0 0.0
    %188 = vmatpush1.msra.mxu0 0.0
    %189 = vmatprep.subr.mxu0 0.0
    %190 = vmatpush1.msra.mxu0 0.0
    %191 = vmatprep.subr.mxu0 0.0
    %192 = vmatpush1.msra.mxu0 0.0
    %193 = vmatprep.subr.mxu0 0.0
    %194 = vmatpush1.msra.mxu0 0.0
    %195 = vmatprep.subr.mxu0 0.0
    %196 = vmatpush1.msra.mxu0 0.0
    %197 = vmatprep.subr.mxu0 0.0
    %198 = vmatpush1.msra.mxu0 0.0
    %199 = vmatprep.subr.mxu0 0.0
    %200 = vmatpush1.msra.mxu0 0.0
    %201 = vmatprep.subr.mxu0 0.0
    %202 = vmatpush1.msra.mxu0 0.0
    %203 = vmatprep.subr.mxu0 0.0
    %204 = vmatpush1.msra.mxu0 0.0
    %205 = vmatprep.subr.mxu0 0.0
    %206 = vmatpush1.msra.mxu0 0.0
    %207 = vmatprep.subr.mxu0 0.0
    %208 = vmatpush1.msra.mxu0 0.0
    %209 = vmatprep.mubr.f32.mxu0 0.0
    %210 = vmatmul.mubr.f32.gmra.mrb[0].mxu0 %v140
    %v211 = vpop.f32.mrb[0].mxu0
    %v212 = vadd.f32 %v144, %v211
    %v213 = vpop.f32.mrb[0].mxu0
    %214 = vdwg.mxu0
    %vm215 = vcmask 23552
    %216 = vst.msk [vmem:[%s2] sm:$0xff] %vm215, %v212
    // Predicated region
    $region18: #{winenet_forward.1} parent=1 // pred_check
      _
    $region19: #{winenet_forward.1} parent=1 // pred_check_branch
      %218 = sbr.rel (0) target = $region21
    $region20: #{winenet_forward.1} parent=1 // pred_region
      _
    $region21: #{winenet_forward.1} parent=1 // pred_fallthru
      _
    // Predicated region
    $region22: #{winenet_forward.1} parent=1 // pred_check
      _
    $region23: #{winenet_forward.1} parent=1 // pred_check_branch
      %220 = sbr.rel (0) target = $region25
    $region24: #{winenet_forward.1} parent=1 // pred_region
      _
    $region25: #{winenet_forward.1} parent=1 // pred_fallthru
      _
    %221 = vsyncpa [#allocation4], 1
    %222 = vsyncpa [#allocation6], 1

</llo_original>
